<compile_context>
chip_gen: v6e
topology: v6e:2x2x1
jax: 0.10.0
libtpu: 0.0.40
codegen_flags: <defaults>
</compile_context>

<pallas_src>
import math

import jax
import jax.numpy as jnp
import numpy as np
from jax import lax
from jax.experimental import pallas as pl
from jax.experimental.pallas import tpu as pltpu

LANE = 128
SUBLANE = 8

# Per-block VMEM byte budgets (per stream, before double buffering).  Sized so the
# whole pipeline stays well inside v5e's 16 MiB scoped-VMEM default.
_SSE_BLOCK_BYTES = 1 << 20     # x_hat / target blocks
_BPP_BLOCK_BYTES = 512 << 10   # likelihood / mask blocks


def _cdiv(a, b):
    return -(-a // b)


def _round_up(x, m):
    return _cdiv(x, m) * m


# ------------------------------ stream preparation ---------------------------

def _prep_bpp_stream(lik, mask, block_bytes):
    """Reshape (free bitcast) a likelihood/mask pair to 2D (rows, cols), pick a
    row block, and pad rows only when the block does not divide them.  Padding
    values (lik=1, mask=0) contribute exactly zero to the sum."""
    assert lik.shape == mask.shape
    shape = lik.shape
    if lik.ndim >= 2:
        cols = int(shape[-1]) * int(shape[-2])
    else:
        cols = int(shape[-1])
    cols = max(cols, 1)
    rows = max(int(lik.size) // cols, 1)
    lik2 = lik.reshape(rows, cols)
    mask2 = mask.reshape(rows, cols)

    bytes_per_row = cols * 4
    max_rows = max(block_bytes // bytes_per_row, 1)
    if rows <= max_rows:
        row_block = rows                                   # single full-extent block
    else:
        row_block = max(SUBLANE, (max_rows // SUBLANE) * SUBLANE)
    n_blocks = _cdiv(rows, row_block)
    padded = n_blocks * row_block
    if padded != rows:
        lik2 = jnp.pad(lik2, ((0, padded - rows), (0, 0)), constant_values=1)
        mask2 = jnp.pad(mask2, ((0, padded - rows), (0, 0)), constant_values=0)
    return lik2, mask2, row_block, cols, n_blocks


def _prep_sse_stream(x, t, block_bytes):
    """Reshape x/target to (N, C, H*W) (free bitcast) and pick a lane block.
    Pads the spatial axis only when the block does not divide it."""
    n_im, c_in = int(x.shape[0]), int(x.shape[1])
    hw = int(np.prod(x.shape[2:]))
    x2 = x.reshape(n_im, c_in, hw)
    t2 = t.reshape(n_im, c_in, hw)

    bytes_per_lane = n_im * _round_up(c_in, SUBLANE) * 4   # sublane-padded accounting
    max_lanes = max(block_bytes // bytes_per_lane, LANE)
    if hw <= max_lanes:
        tl = hw                                            # single full-extent block
    else:
        tl = (max_lanes // LANE) * LANE
    n_blocks = _cdiv(hw, tl)
    padded = n_blocks * tl
    if padded != hw:
        x2 = jnp.pad(x2, ((0, 0), (0, 0), (0, padded - hw)))
        t2 = jnp.pad(t2, ((0, 0), (0, 0), (0, padded - hw)))
    return x2, t2, tl, hw, n_blocks


# --------------------------------- kernel ------------------------------------

def _make_kernel(*, fuse_proj, n_im, c_in, c_out, tl, hw,
                 n_sse, n_y, n_z, num_steps):

    def kernel(*refs):
        if fuse_proj:
            (ws_ref, wd_ref, db_ref,
             x_ref, t_ref, yl_ref, ym_ref, zl_ref, zm_ref,
             bpp_out, sse_out, acc_y, acc_z, acc_s) = refs
        else:
            ws_ref = wd_ref = db_ref = None
            (x_ref, t_ref, yl_ref, ym_ref, zl_ref, zm_ref,
             bpp_out, sse_out, acc_y, acc_z, acc_s) = refs

        step = pl.program_id(0)

        @pl.when(step == 0)
        def _init():
            acc_y[...] = jnp.zeros_like(acc_y)
            acc_z[...] = jnp.zeros_like(acc_z)
            acc_s[...] = jnp.zeros_like(acc_s)

        def _bpp_update(lik_ref, mask_ref, acc_ref):
            lik = lik_ref[...].astype(jnp.float32)
            m = mask_ref[...].astype(jnp.float32)
            active = m > 0.0
            safe = jnp.where(active, lik, 1.0)              # avoid log(0) when masked out
            acc_ref[...] += jnp.where(active, jnp.log(safe) * m, 0.0)

        @pl.when(step < n_y)
        def _y():
            _bpp_update(yl_ref, ym_ref, acc_y)

        @pl.when(step < n_z)
        def _z():
            _bpp_update(zl_ref, zm_ref, acc_z)

        @pl.when(step < n_sse)
        def _sse():
            lane0 = step * tl
            if fuse_proj:
                lane = lax.broadcasted_iota(jnp.int32, (n_im, tl), 1) + lane0
                valid = lane < hw
                xs = [x_ref[:, c, :].astype(jnp.float32) for c in range(c_in)]
                ts = [t_ref[:, c, :].astype(jnp.float32) for c in range(c_in)]
                sq = jnp.zeros((n_im, tl), jnp.float32)
                for o in range(c_out):
                    # ps_o - pt_o, kept on the VPU (scalar*vector mul-adds; no MXU)
                    d = ws_ref[o, 0] * xs[0] - wd_ref[o, 0] * ts[0] + db_ref[o]
                    for c in range(1, c_in):
                        d = d + ws_ref[o, c] * xs[c] - wd_ref[o, c] * ts[c]
                    sq = sq + jnp.where(valid, d * d, 0.0)
                acc_s[...] += sq
            else:
                lane = lax.broadcasted_iota(jnp.int32, (n_im, c_in, tl), 2) + lane0
                valid = lane < hw
                d = x_ref[...].astype(jnp.float32) - t_ref[...].astype(jnp.float32)
                acc_s[...] += jnp.where(valid, d * d, 0.0)

        @pl.when(step == num_steps - 1)
        def _finalize():
            bpp_total = jnp.sum(acc_y[...]) + jnp.sum(acc_z[...])
            bpp_out[...] = jnp.zeros_like(bpp_out) + bpp_total
            sse_out[...] = jnp.zeros_like(sse_out) + jnp.sum(acc_s[...])

    return kernel


# --------------------------- fused reduction wrapper --------------------------

def _fused_loss_sums(x_src, x_dst, proj, y_lik, y_mask, z_lik, z_mask, *,
                     sse_block_bytes=_SSE_BLOCK_BYTES,
                     bpp_block_bytes=_BPP_BLOCK_BYTES):
    """Returns (sum(log(lik)*mask) over y and z, sum((pr_src(x_src)-pr_dst(x_dst))**2)).

    proj is None (inputs already projected; plain difference) or
    (w_src, w_dst, bias_diff) for a fused 1x1 pointwise projection."""
    assert x_src.shape == x_dst.shape
    n_im, c_in = int(x_src.shape[0]), int(x_src.shape[1])

    x2, t2, tl, hw, n_sse = _prep_sse_stream(x_src, x_dst, sse_block_bytes)
    yl, ym, y_rb, y_cols, n_y = _prep_bpp_stream(y_lik, y_mask, bpp_block_bytes)
    zl, zm, z_rb, z_cols, n_z = _prep_bpp_stream(z_lik, z_mask, bpp_block_bytes)

    num_steps = max(n_sse, n_y, n_z)
    fuse_proj = proj is not None

    # Clamped index maps: finished streams re-present their last block (no new DMA)
    # while their accumulation is gated off inside the kernel.
    sse_map = lambda i: (0, 0, jnp.minimum(i, n_sse - 1))
    y_map = lambda i: (jnp.minimum(i, n_y - 1), 0)
    z_map = lambda i: (jnp.minimum(i, n_z - 1), 0)

    in_specs = []
    args = []
    if fuse_proj:
        w_src, w_dst, bias_diff = proj
        assert w_src.shape == w_dst.shape and int(w_src.shape[1]) == c_in
        c_out = int(w_src.shape[0])
        smem = pl.BlockSpec(memory_space=pltpu.MemorySpace.SMEM)
        in_specs += [smem, smem, smem]
        args += [w_src.astype(jnp.float32), w_dst.astype(jnp.float32),
                 bias_diff.astype(jnp.float32)]
    else:
        c_out = c_in

    in_specs += [
        pl.BlockSpec((n_im, c_in, tl), sse_map),
        pl.BlockSpec((n_im, c_in, tl), sse_map),
        pl.BlockSpec((y_rb, y_cols), y_map),
        pl.BlockSpec((y_rb, y_cols), y_map),
        pl.BlockSpec((z_rb, z_cols), z_map),
        pl.BlockSpec((z_rb, z_cols), z_map),
    ]
    args += [x2, t2, yl, ym, zl, zm]

    out_spec = pl.BlockSpec((1, 1), lambda i: (0, 0))
    acc_s_shape = (n_im, tl) if fuse_proj else (n_im, c_in, tl)

    kernel = _make_kernel(fuse_proj=fuse_proj, n_im=n_im, c_in=c_in, c_out=c_out,
                          tl=tl, hw=hw, n_sse=n_sse, n_y=n_y, n_z=n_z,
                          num_steps=num_steps)

    bpp_sum, sse_sum = pl.pallas_call(
        kernel,
        out_shape=(jax.ShapeDtypeStruct((1, 1), jnp.float32),
                   jax.ShapeDtypeStruct((1, 1), jnp.float32)),
        grid_spec=pltpu.PrefetchScalarGridSpec(
            num_scalar_prefetch=0,
            grid=(num_steps,),
            in_specs=in_specs,
            out_specs=[out_spec, out_spec],
            scratch_shapes=[pltpu.VMEM((y_rb, y_cols), jnp.float32),
                            pltpu.VMEM((z_rb, z_cols), jnp.float32),
                            pltpu.VMEM(acc_s_shape, jnp.float32)]),
        compiler_params=pltpu.CompilerParams(
            dimension_semantics=("arbitrary",),
            vmem_limit_bytes=32 * 1024 * 1024),
    )(*args)

    return bpp_sum[0, 0], sse_sum[0, 0]


# ------------------------------ loss module (JAX) -----------------------------

class PointwiseConv:
    """1x1 pointwise projection on NCHW: y[n,o,h,w] = sum_c W[o,c] x[n,c,h,w] + b[o]."""

    def __init__(self, weight, bias=None):
        self.weight = weight        # (C_out, C_in)
        self.bias = bias            # (C_out,) or None

    def __call__(self, x):
        y = jnp.einsum('oc,nchw->nohw', self.weight, x)
        if self.bias is not None:
            y = y + self.bias.reshape(1, -1, 1, 1)
        return y


class RateDistortionLossPConv2:
    """JAX/Pallas port of the PyTorch RateDistortionLossPConv2 (metric='mse')."""

    def __init__(self, lmbda=0.01, metric='mse', return_type='all'):
        if metric != 'mse':
            # TODO(synk): SSIM metric path (grouped Gaussian conv) not implemented.
            raise NotImplementedError(f'{metric} is not implemented in this Pallas port')
        self.lmbda = lmbda
        self.return_type = return_type

    def __call__(self, output, target, pr_src, pr_dst):
        N, _, H, W = target.shape
        num_pixels = N * H * W
        x_hat = output['x_hat']

        fuse = isinstance(pr_src, PointwiseConv) and isinstance(pr_dst, PointwiseConv)
        if fuse:
            ws, wd = pr_src.weight, pr_dst.weight
            c_out = int(ws.shape[0])
            bs = pr_src.bias if pr_src.bias is not None else jnp.zeros((c_out,), ws.dtype)
            bd = pr_dst.bias if pr_dst.bias is not None else jnp.zeros((c_out,), wd.dtype)
            proj = (ws, wd, bs - bd)
            x_src, x_dst = x_hat, target
            n_proj_elems = int(x_hat.shape[0]) * c_out * int(x_hat.shape[2]) * int(x_hat.shape[3])
        else:
            # generic projections: apply outside, stream the projected tensors
            x_src, x_dst = pr_src(x_hat), pr_dst(target)
            proj = None
            n_proj_elems = int(x_src.size)

        bpp_sum, sse_sum = _fused_loss_sums(
            x_src, x_dst, proj,
            output['likelihoods']['y'], output['y_mask'],
            output['likelihoods']['z'], output['z_mask'])

        out = {}
        out['bpp_loss'] = bpp_sum / (-math.log(2) * num_pixels)
        # PMSE(size_average=True, mask=None) == mean of squared error over all elements
        out['mse_loss'] = sse_sum / n_proj_elems
        distortion = (255.0 ** 2) * out['mse_loss']
        out['loss'] = self.lmbda * distortion + out['bpp_loss']

        if self.return_type == 'all':
            return out
        return out[self.return_type]


# ---------------------------------- main --------------------------------------

if __name__ == "__main__":
    key = jax.random.PRNGKey(0)
    k = jax.random.split(key, 16)

    N, C, H, W = 2, 3, 16, 16         # image
    My, Hy, Wy = 8, 4, 4              # y latent
    Mz, Hz, Wz = 8, 2, 2              # z latent

    target = jax.random.normal(k[0], (N, C, H, W), jnp.float32)
    x_hat = target + 0.05 * jax.random.normal(k[1], (N, C, H, W), jnp.float32)

    y_lik = jax.random.uniform(k[2], (N, My, Hy, Wy), jnp.float32, 0.01, 1.0)
    z_lik = jax.random.uniform(k[3], (N, Mz, Hz, Wz), jnp.float32, 0.01, 1.0)
    y_mask = (jax.random.uniform(k[4], (N, My, Hy, Wy)) > 0.3).astype(jnp.float32)
    z_mask = (jax.random.uniform(k[5], (N, Mz, Hz, Wz)) > 0.3).astype(jnp.float32)

    output = {
        'likelihoods': {'y': y_lik, 'z': z_lik},
        'y_mask': y_mask,
        'z_mask': z_mask,
        'x_hat': x_hat,
    }

    w_src = 0.1 * jax.random.normal(k[6], (C, C), jnp.float32) + jnp.eye(C, dtype=jnp.float32)
    w_dst = 0.1 * jax.random.normal(k[7], (C, C), jnp.float32) + jnp.eye(C, dtype=jnp.float32)
    b_src = 0.05 * jax.random.normal(k[8], (C,), jnp.float32)
    b_dst = 0.05 * jax.random.normal(k[9], (C,), jnp.float32)
    pr_src = PointwiseConv(w_src, b_src)
    pr_dst = PointwiseConv(w_dst, b_dst)

    criterion = RateDistortionLossPConv2(lmbda=0.01, metric='mse', return_type='all')

    # --- check 1: fused 1x1 projection path -----------------------------------
    out = jax.block_until_ready(criterion(output, target, pr_src, pr_dst))

    num_pixels = N * H * W
    bpp_ref = ((jnp.log(y_lik) * y_mask).sum() + (jnp.log(z_lik) * z_mask).sum()) / (
        -math.log(2) * num_pixels)
    ps_ref, pt_ref = pr_src(x_hat), pr_dst(target)
    mse_ref = jnp.mean(jnp.square(ps_ref - pt_ref))
    loss_ref = 0.01 * (255.0 ** 2) * mse_ref + bpp_ref

    assert jnp.allclose(out['bpp_loss'], bpp_ref, rtol=1e-5, atol=1e-6)
    assert jnp.allclose(out['mse_loss'], mse_ref, rtol=1e-5, atol=1e-6)
    assert jnp.allclose(out['loss'], loss_ref, rtol=1e-5, atol=1e-4)

    # --- check 2: generic (non-pointwise) pr_src/pr_dst -> fallback path -------
    pr2_src = lambda x: x
    pr2_dst = lambda x: 0.9 * x + 0.1
    out2 = jax.block_until_ready(criterion(output, target, pr2_src, pr2_dst))
    mse2_ref = jnp.mean(jnp.square(pr2_src(x_hat) - pr2_dst(target)))
    loss2_ref = 0.01 * (255.0 ** 2) * mse2_ref + bpp_ref
    assert jnp.allclose(out2['bpp_loss'], bpp_ref, rtol=1e-5, atol=1e-6)
    assert jnp.allclose(out2['mse_loss'], mse2_ref, rtol=1e-5, atol=1e-6)
    assert jnp.allclose(out2['loss'], loss2_ref, rtol=1e-5, atol=1e-4)

    # --- check 3: multi-block / ragged-tail / clamped-stream path --------------
    H2, W2 = 18, 14
    x_a = jax.random.normal(k[10], (N, C, H2, W2), jnp.float32)
    x_b = x_a + 0.1 * jax.random.normal(k[11], (N, C, H2, W2), jnp.float32)
    yl2 = jax.random.uniform(k[12], (N, 5, 4, 4), jnp.float32, 0.01, 1.0)
    ym2 = (jax.random.uniform(k[13], (N, 5, 4, 4)) > 0.4).astype(jnp.float32)
    zl2 = jax.random.uniform(k[14], (N, 8, 2, 2), jnp.float32, 0.01, 1.0)
    zm2 = (jax.random.uniform(k[15], (N, 8, 2, 2)) > 0.4).astype(jnp.float32)

    bpp2, sse2 = _fused_loss_sums(x_a, x_b, (w_src, w_dst, b_src - b_dst),
                                  yl2, ym2, zl2, zm2,
                                  sse_block_bytes=8 * 1024,
                                  bpp_block_bytes=512)
    bpp2, sse2 = jax.block_until_ready((bpp2, sse2))
    bpp2_ref = (jnp.log(yl2) * ym2).sum() + (jnp.log(zl2) * zm2).sum()
    sse2_ref = jnp.sum(jnp.square(pr_src(x_a) - pr_dst(x_b)))
    assert jnp.allclose(bpp2, bpp2_ref, rtol=1e-5, atol=1e-4)
    assert jnp.allclose(sse2, sse2_ref, rtol=1e-5, atol=1e-4)

    print("KERNEL_OK")
</pallas_src>

<mosaic_0001>
module attributes {stable_mosaic.version = 11 : i64} {
  func.func @kernel(%arg0: i32, %arg1: memref<3x3xf32, #tpu.memory_space<smem>>, %arg2: memref<3x3xf32, #tpu.memory_space<smem>>, %arg3: memref<3xf32, #tpu.memory_space<smem>>, %arg4: memref<2x3x256xf32, #tpu.memory_space<vmem>>, %arg5: memref<2x3x256xf32, #tpu.memory_space<vmem>>, %arg6: memref<16x16xf32, #tpu.memory_space<vmem>>, %arg7: memref<16x16xf32, #tpu.memory_space<vmem>>, %arg8: memref<16x4xf32, #tpu.memory_space<vmem>>, %arg9: memref<16x4xf32, #tpu.memory_space<vmem>>, %arg10: memref<1x1xf32, #tpu.memory_space<vmem>>, %arg11: memref<1x1xf32, #tpu.memory_space<vmem>>, %arg12: memref<16x16xf32, #tpu.memory_space<vmem>>, %arg13: memref<16x4xf32, #tpu.memory_space<vmem>>, %arg14: memref<2x256xf32, #tpu.memory_space<vmem>>) attributes {dimension_semantics = [#tpu.dimension_semantics<arbitrary>], iteration_bounds = array<i64: 1>, scalar_prefetch = 0 : i64, scratch_operands = 3 : i64, tpu.core_type = #tpu.core_type<tc>, window_params = [{transform_indices = @transform_0, window_bounds = array<i64: 3, 3>}, {transform_indices = @transform_1, window_bounds = array<i64: 3, 3>}, {transform_indices = @transform_2, window_bounds = array<i64: 3>}, {transform_indices = @transform_3, window_bounds = array<i64: 2, 3, 256>}, {transform_indices = @transform_4, window_bounds = array<i64: 2, 3, 256>}, {transform_indices = @transform_5, window_bounds = array<i64: 16, 16>}, {transform_indices = @transform_6, window_bounds = array<i64: 16, 16>}, {transform_indices = @transform_7, window_bounds = array<i64: 16, 4>}, {transform_indices = @transform_8, window_bounds = array<i64: 16, 4>}, {pipeline_mode = #tpu.pipeline_mode<synchronous>, transform_indices = @transform_9, window_bounds = array<i64: 1, 1>}, {pipeline_mode = #tpu.pipeline_mode<synchronous>, transform_indices = @transform_10, window_bounds = array<i64: 1, 1>}]} {
    %c0_i32 = arith.constant 0 : i32
    %0 = arith.cmpi eq, %arg0, %c0_i32 : i32
    %1 = arith.extui %0 : i1 to i32
    %c0_i32_0 = arith.constant 0 : i32
    %2 = arith.cmpi ne, %1, %c0_i32_0 : i32
    scf.if %2 {
      %cst = arith.constant 0.000000e+00 : f32
      %15 = vector.broadcast %cst : f32 to vector<16x16xf32>
      %c0 = arith.constant 0 : index
      %c0_8 = arith.constant 0 : index
      %16 = vector.load %arg12[%c0, %c0_8] : memref<16x16xf32, #tpu.memory_space<vmem>>, vector<16x16xf32>
      tpu.vector_store %arg12[%c0, %c0_8], %15 {strides = array<i32>} : memref<16x16xf32, #tpu.memory_space<vmem>>, vector<16x16xf32>,
      %cst_9 = arith.constant 0.000000e+00 : f32
      %17 = vector.broadcast %cst_9 : f32 to vector<16x4xf32>
      %c0_10 = arith.constant 0 : index
      %c0_11 = arith.constant 0 : index
      %18 = vector.load %arg13[%c0_10, %c0_11] : memref<16x4xf32, #tpu.memory_space<vmem>>, vector<16x4xf32>
      tpu.vector_store %arg13[%c0_10, %c0_11], %17 {strides = array<i32>} : memref<16x4xf32, #tpu.memory_space<vmem>>, vector<16x4xf32>,
      %cst_12 = arith.constant 0.000000e+00 : f32
      %19 = vector.broadcast %cst_12 : f32 to vector<2x256xf32>
      %c0_13 = arith.constant 0 : index
      %c0_14 = arith.constant 0 : index
      %20 = vector.load %arg14[%c0_13, %c0_14] : memref<2x256xf32, #tpu.memory_space<vmem>>, vector<2x256xf32>
      tpu.vector_store %arg14[%c0_13, %c0_14], %19 {strides = array<i32>} : memref<2x256xf32, #tpu.memory_space<vmem>>, vector<2x256xf32>,
    } else {
    }
    %c1_i32 = arith.constant 1 : i32
    %3 = arith.cmpi slt, %arg0, %c1_i32 : i32
    %4 = arith.extui %3 : i1 to i32
    %c0_i32_1 = arith.constant 0 : i32
    %5 = arith.cmpi ne, %4, %c0_i32_1 : i32
    scf.if %5 {
      %c0 = arith.constant 0 : index
      %c0_8 = arith.constant 0 : index
      %15 = vector.load %arg6[%c0, %c0_8] : memref<16x16xf32, #tpu.memory_space<vmem>>, vector<16x16xf32>
      %c0_9 = arith.constant 0 : index
      %c0_10 = arith.constant 0 : index
      %16 = vector.load %arg7[%c0_9, %c0_10] : memref<16x16xf32, #tpu.memory_space<vmem>>, vector<16x16xf32>
      %cst = arith.constant 0.000000e+00 : f32
      %17 = vector.broadcast %cst : f32 to vector<16x16xf32>
      %18 = arith.cmpf ogt, %16, %17 : vector<16x16xf32>
      %cst_11 = arith.constant 1.000000e+00 : f32
      %19 = vector.broadcast %cst_11 : f32 to vector<16x16xf32>
      %20 = arith.select %18, %15, %19 : vector<16x16xi1>, vector<16x16xf32>
      %c0_12 = arith.constant 0 : index
      %c0_13 = arith.constant 0 : index
      %21 = vector.load %arg12[%c0_12, %c0_13] : memref<16x16xf32, #tpu.memory_space<vmem>>, vector<16x16xf32>
      %22 = math.log %20 : vector<16x16xf32>
      %23 = arith.mulf %22, %16 : vector<16x16xf32>
      %cst_14 = arith.constant 0.000000e+00 : f32
      %24 = vector.broadcast %cst_14 : f32 to vector<16x16xf32>
      %25 = arith.select %18, %23, %24 : vector<16x16xi1>, vector<16x16xf32>
      %26 = arith.addf %21, %25 : vector<16x16xf32>
      %c0_15 = arith.constant 0 : index
      %c0_16 = arith.constant 0 : index
      %27 = vector.load %arg12[%c0_15, %c0_16] : memref<16x16xf32, #tpu.memory_space<vmem>>, vector<16x16xf32>
      tpu.vector_store %arg12[%c0_15, %c0_16], %26 {strides = array<i32>} : memref<16x16xf32, #tpu.memory_space<vmem>>, vector<16x16xf32>,
    } else {
    }
    %c1_i32_2 = arith.constant 1 : i32
    %6 = arith.cmpi slt, %arg0, %c1_i32_2 : i32
    %7 = arith.extui %6 : i1 to i32
    %c0_i32_3 = arith.constant 0 : i32
    %8 = arith.cmpi ne, %7, %c0_i32_3 : i32
    scf.if %8 {
      %c0 = arith.constant 0 : index
      %c0_8 = arith.constant 0 : index
      %15 = vector.load %arg8[%c0, %c0_8] : memref<16x4xf32, #tpu.memory_space<vmem>>, vector<16x4xf32>
      %c0_9 = arith.constant 0 : index
      %c0_10 = arith.constant 0 : index
      %16 = vector.load %arg9[%c0_9, %c0_10] : memref<16x4xf32, #tpu.memory_space<vmem>>, vector<16x4xf32>
      %cst = arith.constant 0.000000e+00 : f32
      %17 = vector.broadcast %cst : f32 to vector<16x4xf32>
      %18 = arith.cmpf ogt, %16, %17 : vector<16x4xf32>
      %cst_11 = arith.constant 1.000000e+00 : f32
      %19 = vector.broadcast %cst_11 : f32 to vector<16x4xf32>
      %20 = arith.select %18, %15, %19 : vector<16x4xi1>, vector<16x4xf32>
      %c0_12 = arith.constant 0 : index
      %c0_13 = arith.constant 0 : index
      %21 = vector.load %arg13[%c0_12, %c0_13] : memref<16x4xf32, #tpu.memory_space<vmem>>, vector<16x4xf32>
      %22 = math.log %20 : vector<16x4xf32>
      %23 = arith.mulf %22, %16 : vector<16x4xf32>
      %cst_14 = arith.constant 0.000000e+00 : f32
      %24 = vector.broadcast %cst_14 : f32 to vector<16x4xf32>
      %25 = arith.select %18, %23, %24 : vector<16x4xi1>, vector<16x4xf32>
      %26 = arith.addf %21, %25 : vector<16x4xf32>
      %c0_15 = arith.constant 0 : index
      %c0_16 = arith.constant 0 : index
      %27 = vector.load %arg13[%c0_15, %c0_16] : memref<16x4xf32, #tpu.memory_space<vmem>>, vector<16x4xf32>
      tpu.vector_store %arg13[%c0_15, %c0_16], %26 {strides = array<i32>} : memref<16x4xf32, #tpu.memory_space<vmem>>, vector<16x4xf32>,
    } else {
    }
    %c1_i32_4 = arith.constant 1 : i32
    %9 = arith.cmpi slt, %arg0, %c1_i32_4 : i32
    %10 = arith.extui %9 : i1 to i32
    %c0_i32_5 = arith.constant 0 : i32
    %11 = arith.cmpi ne, %10, %c0_i32_5 : i32
    scf.if %11 {
      %c256_i32 = arith.constant 256 : i32
      %15 = arith.muli %arg0, %c256_i32 : i32
      %16 = tpu.iota {dimensions = array<i32: 1>} : vector<2x256xi32>
      %17 = vector.broadcast %15 : i32 to vector<2x256xi32>
      %18 = arith.addi %16, %17 : vector<2x256xi32>
      %c256_i32_8 = arith.constant 256 : i32
      %19 = vector.broadcast %c256_i32_8 : i32 to vector<2x256xi32>
      %20 = arith.cmpi slt, %18, %19 : vector<2x256xi32>
      %c0 = arith.constant 0 : index
      %c0_9 = arith.constant 0 : index
      %c0_10 = arith.constant 0 : index
      %21 = vector.load %arg4[%c0, %c0_9, %c0_10] : memref<2x3x256xf32, #tpu.memory_space<vmem>>, vector<2x1x256xf32>
      %22 = vector.shape_cast %21 : vector<2x1x256xf32> to vector<2x256xf32>
      %c0_11 = arith.constant 0 : index
      %c1 = arith.constant 1 : index
      %c0_12 = arith.constant 0 : index
      %23 = vector.load %arg4[%c0_11, %c1, %c0_12] : memref<2x3x256xf32, #tpu.memory_space<vmem>>, vector<2x1x256xf32>
      %24 = vector.shape_cast %23 : vector<2x1x256xf32> to vector<2x256xf32>
      %c0_13 = arith.constant 0 : index
      %c2 = arith.constant 2 : index
      %c0_14 = arith.constant 0 : index
      %25 = vector.load %arg4[%c0_13, %c2, %c0_14] : memref<2x3x256xf32, #tpu.memory_space<vmem>>, vector<2x1x256xf32>
      %26 = vector.shape_cast %25 : vector<2x1x256xf32> to vector<2x256xf32>
      %c0_15 = arith.constant 0 : index
      %c0_16 = arith.constant 0 : index
      %c0_17 = arith.constant 0 : index
      %27 = vector.load %arg5[%c0_15, %c0_16, %c0_17] : memref<2x3x256xf32, #tpu.memory_space<vmem>>, vector<2x1x256xf32>
      %28 = vector.shape_cast %27 : vector<2x1x256xf32> to vector<2x256xf32>
      %c0_18 = arith.constant 0 : index
      %c1_19 = arith.constant 1 : index
      %c0_20 = arith.constant 0 : index
      %29 = vector.load %arg5[%c0_18, %c1_19, %c0_20] : memref<2x3x256xf32, #tpu.memory_space<vmem>>, vector<2x1x256xf32>
      %30 = vector.shape_cast %29 : vector<2x1x256xf32> to vector<2x256xf32>
      %c0_21 = arith.constant 0 : index
      %c2_22 = arith.constant 2 : index
      %c0_23 = arith.constant 0 : index
      %31 = vector.load %arg5[%c0_21, %c2_22, %c0_23] : memref<2x3x256xf32, #tpu.memory_space<vmem>>, vector<2x1x256xf32>
      %32 = vector.shape_cast %31 : vector<2x1x256xf32> to vector<2x256xf32>
      %cst = arith.constant 0.000000e+00 : f32
      %33 = vector.broadcast %cst : f32 to vector<2x256xf32>
      %c0_24 = arith.constant 0 : index
      %c0_25 = arith.constant 0 : index
      %34 = memref.load %arg1[%c0_24, %c0_25] : memref<3x3xf32, #tpu.memory_space<smem>>
      %35 = vector.broadcast %34 : f32 to vector<2x256xf32>
      %36 = arith.mulf %35, %22 : vector<2x256xf32>
      %c0_26 = arith.constant 0 : index
      %c0_27 = arith.constant 0 : index
      %37 = memref.load %arg2[%c0_26, %c0_27] : memref<3x3xf32, #tpu.memory_space<smem>>
      %38 = vector.broadcast %37 : f32 to vector<2x256xf32>
      %39 = arith.mulf %38, %28 : vector<2x256xf32>
      %40 = arith.subf %36, %39 : vector<2x256xf32>
      %c0_28 = arith.constant 0 : index
      %41 = memref.load %arg3[%c0_28] : memref<3xf32, #tpu.memory_space<smem>>
      %42 = vector.broadcast %41 : f32 to vector<2x256xf32>
      %43 = arith.addf %40, %42 : vector<2x256xf32>
      %c0_29 = arith.constant 0 : index
      %c1_30 = arith.constant 1 : index
      %44 = memref.load %arg1[%c0_29, %c1_30] : memref<3x3xf32, #tpu.memory_space<smem>>
      %45 = vector.broadcast %44 : f32 to vector<2x256xf32>
      %46 = arith.mulf %45, %24 : vector<2x256xf32>
      %47 = arith.addf %43, %46 : vector<2x256xf32>
      %c0_31 = arith.constant 0 : index
      %c1_32 = arith.constant 1 : index
      %48 = memref.load %arg2[%c0_31, %c1_32] : memref<3x3xf32, #tpu.memory_space<smem>>
      %49 = vector.broadcast %48 : f32 to vector<2x256xf32>
      %50 = arith.mulf %49, %30 : vector<2x256xf32>
      %51 = arith.subf %47, %50 : vector<2x256xf32>
      %c0_33 = arith.constant 0 : index
      %c2_34 = arith.constant 2 : index
      %52 = memref.load %arg1[%c0_33, %c2_34] : memref<3x3xf32, #tpu.memory_space<smem>>
      %53 = vector.broadcast %52 : f32 to vector<2x256xf32>
      %54 = arith.mulf %53, %26 : vector<2x256xf32>
      %55 = arith.addf %51, %54 : vector<2x256xf32>
      %c0_35 = arith.constant 0 : index
      %c2_36 = arith.constant 2 : index
      %56 = memref.load %arg2[%c0_35, %c2_36] : memref<3x3xf32, #tpu.memory_space<smem>>
      %57 = vector.broadcast %56 : f32 to vector<2x256xf32>
      %58 = arith.mulf %57, %32 : vector<2x256xf32>
      %59 = arith.subf %55, %58 : vector<2x256xf32>
      %60 = arith.mulf %59, %59 : vector<2x256xf32>
      %cst_37 = arith.constant 0.000000e+00 : f32
      %61 = vector.broadcast %cst_37 : f32 to vector<2x256xf32>
      %62 = arith.select %20, %60, %61 : vector<2x256xi1>, vector<2x256xf32>
      %63 = arith.addf %33, %62 : vector<2x256xf32>
      %c1_38 = arith.constant 1 : index
      %c0_39 = arith.constant 0 : index
      %64 = memref.load %arg1[%c1_38, %c0_39] : memref<3x3xf32, #tpu.memory_space<smem>>
      %65 = vector.broadcast %64 : f32 to vector<2x256xf32>
      %66 = arith.mulf %65, %22 : vector<2x256xf32>
      %c1_40 = arith.constant 1 : index
      %c0_41 = arith.constant 0 : index
      %67 = memref.load %arg2[%c1_40, %c0_41] : memref<3x3xf32, #tpu.memory_space<smem>>
      %68 = vector.broadcast %67 : f32 to vector<2x256xf32>
      %69 = arith.mulf %68, %28 : vector<2x256xf32>
      %70 = arith.subf %66, %69 : vector<2x256xf32>
      %c1_42 = arith.constant 1 : index
      %71 = memref.load %arg3[%c1_42] : memref<3xf32, #tpu.memory_space<smem>>
      %72 = vector.broadcast %71 : f32 to vector<2x256xf32>
      %73 = arith.addf %70, %72 : vector<2x256xf32>
      %c1_43 = arith.constant 1 : index
      %c1_44 = arith.constant 1 : index
      %74 = memref.load %arg1[%c1_43, %c1_44] : memref<3x3xf32, #tpu.memory_space<smem>>
      %75 = vector.broadcast %74 : f32 to vector<2x256xf32>
      %76 = arith.mulf %75, %24 : vector<2x256xf32>
      %77 = arith.addf %73, %76 : vector<2x256xf32>
      %c1_45 = arith.constant 1 : index
      %c1_46 = arith.constant 1 : index
      %78 = memref.load %arg2[%c1_45, %c1_46] : memref<3x3xf32, #tpu.memory_space<smem>>
      %79 = vector.broadcast %78 : f32 to vector<2x256xf32>
      %80 = arith.mulf %79, %30 : vector<2x256xf32>
      %81 = arith.subf %77, %80 : vector<2x256xf32>
      %c1_47 = arith.constant 1 : index
      %c2_48 = arith.constant 2 : index
      %82 = memref.load %arg1[%c1_47, %c2_48] : memref<3x3xf32, #tpu.memory_space<smem>>
      %83 = vector.broadcast %82 : f32 to vector<2x256xf32>
      %84 = arith.mulf %83, %26 : vector<2x256xf32>
      %85 = arith.addf %81, %84 : vector<2x256xf32>
      %c1_49 = arith.constant 1 : index
      %c2_50 = arith.constant 2 : index
      %86 = memref.load %arg2[%c1_49, %c2_50] : memref<3x3xf32, #tpu.memory_space<smem>>
      %87 = vector.broadcast %86 : f32 to vector<2x256xf32>
      %88 = arith.mulf %87, %32 : vector<2x256xf32>
      %89 = arith.subf %85, %88 : vector<2x256xf32>
      %90 = arith.mulf %89, %89 : vector<2x256xf32>
      %cst_51 = arith.constant 0.000000e+00 : f32
      %91 = vector.broadcast %cst_51 : f32 to vector<2x256xf32>
      %92 = arith.select %20, %90, %91 : vector<2x256xi1>, vector<2x256xf32>
      %93 = arith.addf %63, %92 : vector<2x256xf32>
      %c2_52 = arith.constant 2 : index
      %c0_53 = arith.constant 0 : index
      %94 = memref.load %arg1[%c2_52, %c0_53] : memref<3x3xf32, #tpu.memory_space<smem>>
      %95 = vector.broadcast %94 : f32 to vector<2x256xf32>
      %96 = arith.mulf %95, %22 : vector<2x256xf32>
      %c2_54 = arith.constant 2 : index
      %c0_55 = arith.constant 0 : index
      %97 = memref.load %arg2[%c2_54, %c0_55] : memref<3x3xf32, #tpu.memory_space<smem>>
      %98 = vector.broadcast %97 : f32 to vector<2x256xf32>
      %99 = arith.mulf %98, %28 : vector<2x256xf32>
      %100 = arith.subf %96, %99 : vector<2x256xf32>
      %c2_56 = arith.constant 2 : index
      %101 = memref.load %arg3[%c2_56] : memref<3xf32, #tpu.memory_space<smem>>
      %102 = vector.broadcast %101 : f32 to vector<2x256xf32>
      %103 = arith.addf %100, %102 : vector<2x256xf32>
      %c2_57 = arith.constant 2 : index
      %c1_58 = arith.constant 1 : index
      %104 = memref.load %arg1[%c2_57, %c1_58] : memref<3x3xf32, #tpu.memory_space<smem>>
      %105 = vector.broadcast %104 : f32 to vector<2x256xf32>
      %106 = arith.mulf %105, %24 : vector<2x256xf32>
      %107 = arith.addf %103, %106 : vector<2x256xf32>
      %c2_59 = arith.constant 2 : index
      %c1_60 = arith.constant 1 : index
      %108 = memref.load %arg2[%c2_59, %c1_60] : memref<3x3xf32, #tpu.memory_space<smem>>
      %109 = vector.broadcast %108 : f32 to vector<2x256xf32>
      %110 = arith.mulf %109, %30 : vector<2x256xf32>
      %111 = arith.subf %107, %110 : vector<2x256xf32>
      %c2_61 = arith.constant 2 : index
      %c2_62 = arith.constant 2 : index
      %112 = memref.load %arg1[%c2_61, %c2_62] : memref<3x3xf32, #tpu.memory_space<smem>>
      %113 = vector.broadcast %112 : f32 to vector<2x256xf32>
      %114 = arith.mulf %113, %26 : vector<2x256xf32>
      %115 = arith.addf %111, %114 : vector<2x256xf32>
      %c2_63 = arith.constant 2 : index
      %c2_64 = arith.constant 2 : index
      %116 = memref.load %arg2[%c2_63, %c2_64] : memref<3x3xf32, #tpu.memory_space<smem>>
      %117 = vector.broadcast %116 : f32 to vector<2x256xf32>
      %118 = arith.mulf %117, %32 : vector<2x256xf32>
      %119 = arith.subf %115, %118 : vector<2x256xf32>
      %120 = arith.mulf %119, %119 : vector<2x256xf32>
      %cst_65 = arith.constant 0.000000e+00 : f32
      %121 = vector.broadcast %cst_65 : f32 to vector<2x256xf32>
      %122 = arith.select %20, %120, %121 : vector<2x256xi1>, vector<2x256xf32>
      %123 = arith.addf %93, %122 : vector<2x256xf32>
      %c0_66 = arith.constant 0 : index
      %c0_67 = arith.constant 0 : index
      %124 = vector.load %arg14[%c0_66, %c0_67] : memref<2x256xf32, #tpu.memory_space<vmem>>, vector<2x256xf32>
      %125 = arith.addf %124, %123 : vector<2x256xf32>
      %c0_68 = arith.constant 0 : index
      %c0_69 = arith.constant 0 : index
      %126 = vector.load %arg14[%c0_68, %c0_69] : memref<2x256xf32, #tpu.memory_space<vmem>>, vector<2x256xf32>
      tpu.vector_store %arg14[%c0_68, %c0_69], %125 {strides = array<i32>} : memref<2x256xf32, #tpu.memory_space<vmem>>, vector<2x256xf32>,
    } else {
    }
    %c0_i32_6 = arith.constant 0 : i32
    %12 = arith.cmpi eq, %arg0, %c0_i32_6 : i32
    %13 = arith.extui %12 : i1 to i32
    %c0_i32_7 = arith.constant 0 : i32
    %14 = arith.cmpi ne, %13, %c0_i32_7 : i32
    scf.if %14 {
      %c0 = arith.constant 0 : index
      %c0_8 = arith.constant 0 : index
      %15 = vector.load %arg12[%c0, %c0_8] : memref<16x16xf32, #tpu.memory_space<vmem>>, vector<16x16xf32>
      %16 = vector.shape_cast %15 : vector<16x16xf32> to vector<1x16x16xf32>
      %cst = arith.constant dense<0.000000e+00> : vector<1xf32>
      %17 = vector.multi_reduction <add>, %16, %cst [1, 2] : vector<1x16x16xf32> to vector<1xf32>
      %18 = vector.shape_cast %17 : vector<1xf32> to vector<1x1x1xf32>
      %19 = vector.extract %18[0, 0, 0] : f32 from vector<1x1x1xf32>
      %c0_9 = arith.constant 0 : index
      %c0_10 = arith.constant 0 : index
      %20 = vector.load %arg13[%c0_9, %c0_10] : memref<16x4xf32, #tpu.memory_space<vmem>>, vector<16x4xf32>
      %21 = vector.shape_cast %20 : vector<16x4xf32> to vector<1x16x4xf32>
      %cst_11 = arith.constant dense<0.000000e+00> : vector<1xf32>
      %22 = vector.multi_reduction <add>, %21, %cst_11 [1, 2] : vector<1x16x4xf32> to vector<1xf32>
      %23 = vector.shape_cast %22 : vector<1xf32> to vector<1x1x1xf32>
      %24 = vector.extract %23[0, 0, 0] : f32 from vector<1x1x1xf32>
      %25 = arith.addf %19, %24 : f32
      %cst_12 = arith.constant 0.000000e+00 : f32
      %26 = vector.broadcast %cst_12 : f32 to vector<1x1xf32>
      %27 = vector.broadcast %25 : f32 to vector<1x1xf32>
      %28 = arith.addf %26, %27 : vector<1x1xf32>
      %c0_13 = arith.constant 0 : index
      %c0_14 = arith.constant 0 : index
      %29 = vector.load %arg10[%c0_13, %c0_14] : memref<1x1xf32, #tpu.memory_space<vmem>>, vector<1x1xf32>
      tpu.vector_store %arg10[%c0_13, %c0_14], %28 {strides = array<i32>} : memref<1x1xf32, #tpu.memory_space<vmem>>, vector<1x1xf32>,
      %cst_15 = arith.constant 0.000000e+00 : f32
      %30 = vector.broadcast %cst_15 : f32 to vector<1x1xf32>
      %c0_16 = arith.constant 0 : index
      %c0_17 = arith.constant 0 : index
      %31 = vector.load %arg14[%c0_16, %c0_17] : memref<2x256xf32, #tpu.memory_space<vmem>>, vector<2x256xf32>
      %32 = vector.shape_cast %31 : vector<2x256xf32> to vector<1x2x256xf32>
      %cst_18 = arith.constant dense<0.000000e+00> : vector<1xf32>
      %33 = vector.multi_reduction <add>, %32, %cst_18 [1, 2] : vector<1x2x256xf32> to vector<1xf32>
      %34 = vector.shape_cast %33 : vector<1xf32> to vector<1x1x1xf32>
      %35 = vector.extract %34[0, 0, 0] : f32 from vector<1x1x1xf32>
      %36 = vector.broadcast %35 : f32 to vector<1x1xf32>
      %37 = arith.addf %30, %36 : vector<1x1xf32>
      %c0_19 = arith.constant 0 : index
      %c0_20 = arith.constant 0 : index
      %38 = vector.load %arg11[%c0_19, %c0_20] : memref<1x1xf32, #tpu.memory_space<vmem>>, vector<1x1xf32>
      tpu.vector_store %arg11[%c0_19, %c0_20], %37 {strides = array<i32>} : memref<1x1xf32, #tpu.memory_space<vmem>>, vector<1x1xf32>,
    } else {
    }
    return
  }
  func.func @transform_0(%arg0: i32) -> (i32, i32) {
    %c0_i32 = arith.constant 0 : i32
    %c0_i32_0 = arith.constant 0 : i32
    %c0_i32_1 = arith.constant 0 : i32
    return %c0_i32, %c0_i32_0 : i32, i32
  }
  func.func @transform_1(%arg0: i32) -> (i32, i32) {
    %c0_i32 = arith.constant 0 : i32
    %c0_i32_0 = arith.constant 0 : i32
    %c0_i32_1 = arith.constant 0 : i32
    return %c0_i32, %c0_i32_0 : i32, i32
  }
  func.func @transform_2(%arg0: i32) -> i32 {
    %c0_i32 = arith.constant 0 : i32
    %c0_i32_0 = arith.constant 0 : i32
    return %c0_i32 : i32
  }
  func.func @transform_3(%arg0: i32) -> (i32, i32, i32) {
    %c0_i32 = arith.constant 0 : i32
    %0 = arith.minsi %arg0, %c0_i32 : i32
    %c0_i32_0 = arith.constant 0 : i32
    %c0_i32_1 = arith.constant 0 : i32
    %c0_i32_2 = arith.constant 0 : i32
    return %c0_i32_0, %c0_i32_1, %0 : i32, i32, i32
  }
  func.func @transform_4(%arg0: i32) -> (i32, i32, i32) {
    %c0_i32 = arith.constant 0 : i32
    %0 = arith.minsi %arg0, %c0_i32 : i32
    %c0_i32_0 = arith.constant 0 : i32
    %c0_i32_1 = arith.constant 0 : i32
    %c0_i32_2 = arith.constant 0 : i32
    return %c0_i32_0, %c0_i32_1, %0 : i32, i32, i32
  }
  func.func @transform_5(%arg0: i32) -> (i32, i32) {
    %c0_i32 = arith.constant 0 : i32
    %0 = arith.minsi %arg0, %c0_i32 : i32
    %c0_i32_0 = arith.constant 0 : i32
    %c0_i32_1 = arith.constant 0 : i32
    return %0, %c0_i32_0 : i32, i32
  }
  func.func @transform_6(%arg0: i32) -> (i32, i32) {
    %c0_i32 = arith.constant 0 : i32
    %0 = arith.minsi %arg0, %c0_i32 : i32
    %c0_i32_0 = arith.constant 0 : i32
    %c0_i32_1 = arith.constant 0 : i32
    return %0, %c0_i32_0 : i32, i32
  }
  func.func @transform_7(%arg0: i32) -> (i32, i32) {
    %c0_i32 = arith.constant 0 : i32
    %0 = arith.minsi %arg0, %c0_i32 : i32
    %c0_i32_0 = arith.constant 0 : i32
    %c0_i32_1 = arith.constant 0 : i32
    return %0, %c0_i32_0 : i32, i32
  }
  func.func @transform_8(%arg0: i32) -> (i32, i32) {
    %c0_i32 = arith.constant 0 : i32
    %0 = arith.minsi %arg0, %c0_i32 : i32
    %c0_i32_0 = arith.constant 0 : i32
    %c0_i32_1 = arith.constant 0 : i32
    return %0, %c0_i32_0 : i32, i32
  }
  func.func @transform_9(%arg0: i32) -> (i32, i32) {
    %c0_i32 = arith.constant 0 : i32
    %c0_i32_0 = arith.constant 0 : i32
    %c0_i32_1 = arith.constant 0 : i32
    return %c0_i32, %c0_i32_0 : i32, i32
  }
  func.func @transform_10(%arg0: i32) -> (i32, i32) {
    %c0_i32 = arith.constant 0 : i32
    %c0_i32_0 = arith.constant 0 : i32
    %c0_i32_1 = arith.constant 0 : i32
    return %c0_i32, %c0_i32_0 : i32, i32
  }
}

</mosaic_0001>

<llo_original>
// kernel: tpu_custom_call.1
$region0: #{tpu_custom_call.1}
  #allocation0 [shape = 'u32[]', space=smem, size = 0x4, offset = 0x4, fixed_abs, tag = 'smem constant byte address 0x4 - core index']
  #allocation1 [shape = 'u32[144,128]{1,0:T(1,128)}', space=vmem, size = 0x12000, scoped, tag = 'internal scratch']
  #allocation2 [shape = 'f32[16,16]{1,0:T(8,128)}', space=vmem, size = 0x2000, scoped, tag = 'scratch operand']
  #allocation3 [shape = 'f32[16,4]{1,0:T(8,128)}', space=vmem, size = 0x2000, scoped, tag = 'scratch operand']
  #allocation4 [shape = 'f32[2,256]{1,0:T(2,128)}', space=vmem, size = 0x800, scoped, tag = 'scratch operand']
  %s0 = inlined_call_operand.vmem [shape: f32[3,3], index: 0, kind: input, shape index: {}]
  %s1 = inlined_call_operand.vmem [shape: f32[3,3], index: 1, kind: input, shape index: {}]
  %s2 = inlined_call_operand.vmem [shape: f32[3], index: 2, kind: input, shape index: {}]
  %s3 = inlined_call_operand.vmem [shape: f32[2,3,256], index: 3, kind: input, shape index: {}]
  %s4 = inlined_call_operand.vmem [shape: f32[2,3,256], index: 4, kind: input, shape index: {}]
  %s5 = inlined_call_operand.vmem [shape: f32[16,16], index: 5, kind: input, shape index: {}]
  %s6 = inlined_call_operand.vmem [shape: f32[16,16], index: 6, kind: input, shape index: {}]
  %s7 = inlined_call_operand.vmem [shape: f32[16,4], index: 7, kind: input, shape index: {}]
  %s8 = inlined_call_operand.vmem [shape: f32[16,4], index: 8, kind: input, shape index: {}]
  %s9 = inlined_call_operand.hbm [shape: f32[1,1], index: 9, kind: output, shape index: {0}]
  %s10 = inlined_call_operand.hbm [shape: f32[1,1], index: 10, kind: output, shape index: {1}]
  %11 = xla_tuple %s9, %s10
  %s12 = sld [smem:[#allocation0]]
  $region78: #{tpu_custom_call.1} parent=0
    _
  %s14 = ssub.s32 1, %s12
  %s15 = scalar_select 0, %s14, %s12
  $region1: #{tpu_custom_call.1} parent=0
    #allocation5 [shape = 'u8[2048]{0}', space=smem, size = 0x800, scoped, tag = 'input window, operand 0, single buffered']
    #allocation6 [shape = 's32[1]{0}', space=sflag, size = 0x4, scoped, tag = 'scoped memory for tpu_custom_call.1']
    #allocation7 [shape = 's32[1]{0}', space=sflag, size = 0x4, scoped, tag = 'scoped memory for tpu_custom_call.1']
    #allocation8 [shape = 'u8[2048]{0}', space=smem, size = 0x800, scoped, tag = 'input window, operand 1, single buffered']
    #allocation9 [shape = 's32[1]{0}', space=sflag, size = 0x4, scoped, tag = 'scoped memory for tpu_custom_call.1']
    #allocation10 [shape = 'u8[512]{0}', space=smem, size = 0x200, scoped, tag = 'input window, operand 2, single buffered']
    #allocation11 [shape = 'u8[512]{0}', space=vmem, size = 0x400, scoped, tag = 'output window, operand 0, single buffered']
    #allocation12 [shape = 'u8[512]{0}', space=vmem, size = 0x400, scoped, tag = 'output window, operand 1, single buffered']
    #allocation13 [shape = 's32[1]{0}', space=sflag, size = 0x4, scoped, tag = 'scoped memory for tpu_custom_call.1']
    %16 = vsyncpa [#allocation7], 0
    %17 = vsyncpa [#allocation9], 0
    %18 = vsyncpa [#allocation6], 0
    %19 = vsyncpa [#allocation13], 0
    // Predicated region
    $region2: #{tpu_custom_call.1} parent=1 // pred_check
      _
    $region3: #{tpu_custom_call.1} parent=1 // pred_check_branch
      %21 = sbr.rel (0) target = $region5
    $region4: #{tpu_custom_call.1} parent=1 // pred_region
      %s23 = ssub.s32 64, 64
      %24 = vsyncadd [#allocation7], %s23
      %s26 = sshll.u32 %s0, 4
      %s27 = int_to_ptr.vmem [resolvable:$true] %s26
      %29 = dma.vmem_to_smem %s27, 64, [#allocation5], [#allocation7]
    $region5: #{tpu_custom_call.1} parent=1 // pred_fallthru
      _
    // Predicated region
    $region6: #{tpu_custom_call.1} parent=1 // pred_check
      _
    $region7: #{tpu_custom_call.1} parent=1 // pred_check_branch
      %31 = sbr.rel (0) target = $region9
    $region8: #{tpu_custom_call.1} parent=1 // pred_region
      %s33 = ssub.s32 64, 64
      %34 = vsyncadd [#allocation9], %s33
      %s36 = sshll.u32 %s1, 4
      %s37 = int_to_ptr.vmem [resolvable:$true] %s36
      %39 = dma.vmem_to_smem %s37, 64, [#allocation8], [#allocation9]
    $region9: #{tpu_custom_call.1} parent=1 // pred_fallthru
      _
    // Predicated region
    $region10: #{tpu_custom_call.1} parent=1 // pred_check
      _
    $region11: #{tpu_custom_call.1} parent=1 // pred_check_branch
      %41 = sbr.rel (0) target = $region13
    $region12: #{tpu_custom_call.1} parent=1 // pred_region
      %s43 = ssub.s32 16, 16
      %44 = vsyncadd [#allocation9], %s43
      %s46 = sshll.u32 %s2, 4
      %s47 = int_to_ptr.vmem [resolvable:$true] %s46
      %49 = dma.vmem_to_smem %s47, 16, [#allocation10], [#allocation9]
    $region13: #{tpu_custom_call.1} parent=1 // pred_fallthru
      _
    // Predicated region
    $region14: #{tpu_custom_call.1} parent=1 // pred_check
      _
    $region15: #{tpu_custom_call.1} parent=1 // pred_check_branch
      %51 = sbr.rel (0) target = $region17
    $region16: #{tpu_custom_call.1} parent=1 // pred_region
      _
    $region17: #{tpu_custom_call.1} parent=1 // pred_fallthru
      _
    // Predicated region
    $region18: #{tpu_custom_call.1} parent=1 // pred_check
      _
    $region19: #{tpu_custom_call.1} parent=1 // pred_check_branch
      %53 = sbr.rel (0) target = $region21
    $region20: #{tpu_custom_call.1} parent=1 // pred_region
      _
    $region21: #{tpu_custom_call.1} parent=1 // pred_fallthru
      _
    // Predicated region
    $region22: #{tpu_custom_call.1} parent=1 // pred_check
      _
    $region23: #{tpu_custom_call.1} parent=1 // pred_check_branch
      %55 = sbr.rel (0) target = $region25
    $region24: #{tpu_custom_call.1} parent=1 // pred_region
      _
    $region25: #{tpu_custom_call.1} parent=1 // pred_fallthru
      _
    // Predicated region
    $region26: #{tpu_custom_call.1} parent=1 // pred_check
      _
    $region27: #{tpu_custom_call.1} parent=1 // pred_check_branch
      %57 = sbr.rel (0) target = $region29
    $region28: #{tpu_custom_call.1} parent=1 // pred_region
      _
    $region29: #{tpu_custom_call.1} parent=1 // pred_fallthru
      _
    // Predicated region
    $region30: #{tpu_custom_call.1} parent=1 // pred_check
      _
    $region31: #{tpu_custom_call.1} parent=1 // pred_check_branch
      %59 = sbr.rel (0) target = $region33
    $region32: #{tpu_custom_call.1} parent=1 // pred_region
      _
    $region33: #{tpu_custom_call.1} parent=1 // pred_fallthru
      _
    // Predicated region
    $region34: #{tpu_custom_call.1} parent=1 // pred_check
      _
    $region35: #{tpu_custom_call.1} parent=1 // pred_check_branch
      %61 = sbr.rel (0) target = $region37
    $region36: #{tpu_custom_call.1} parent=1 // pred_region
      _
    $region37: #{tpu_custom_call.1} parent=1 // pred_fallthru
      _
    // Predicated region
    $region38: #{tpu_custom_call.1} parent=1 // pred_check
      _
    $region39: #{tpu_custom_call.1} parent=1 // pred_check_branch
      %63 = sbr.rel (0) target = $region41
    $region40: #{tpu_custom_call.1} parent=1 // pred_region
      %64 = dma.done [#allocation7], 64
    $region41: #{tpu_custom_call.1} parent=1 // pred_fallthru
      _
    // Predicated region
    $region42: #{tpu_custom_call.1} parent=1 // pred_check
      _
    $region43: #{tpu_custom_call.1} parent=1 // pred_check_branch
      %66 = sbr.rel (0) target = $region45
    $region44: #{tpu_custom_call.1} parent=1 // pred_region
      %67 = dma.done [#allocation9], 64
    $region45: #{tpu_custom_call.1} parent=1 // pred_fallthru
      _
    // Predicated region
    $region46: #{tpu_custom_call.1} parent=1 // pred_check
      _
    $region47: #{tpu_custom_call.1} parent=1 // pred_check_branch
      %69 = sbr.rel (0) target = $region49
    $region48: #{tpu_custom_call.1} parent=1 // pred_region
      %70 = dma.done [#allocation9], 16
    $region49: #{tpu_custom_call.1} parent=1 // pred_fallthru
      _
    %71 = sfence
    %p72 = scmp.eq.s32.totalorder 0, 0
    // Predicated region
    $region50: #{tpu_custom_call.1} parent=1 // pred_check
      %p73 = pneg %p72
    $region51: #{tpu_custom_call.1} parent=1 // pred_check_branch
      %75 = sbr.rel (%p73) target = $region53
    $region52: #{tpu_custom_call.1} parent=1 // pred_region
      %vm76 = vcmask 130048
      %77 = vst.msk [vmem:[#allocation2] sm:$0xff] %vm76, 0.0
      %78 = vst.msk [vmem:[#allocation2 + $0x8] sm:$0xff] %vm76, 0.0
      %vm79 = vcmask 31744
      %80 = vst.msk [vmem:[#allocation3] sm:$0xff] %vm79, 0.0
      %81 = vst.msk [vmem:[#allocation3 + $0x8] sm:$0xff] %vm79, 0.0
      %82 = vst [vmem:[#allocation4] sm:$0xf] 0.0
    $region53: #{tpu_custom_call.1} parent=1 // pred_fallthru
      _
    %p83 = scmp.lt.s32.totalorder 0, 1
    // Predicated region
    $region54: #{tpu_custom_call.1} parent=1 // pred_check
      %p84 = pneg %p83
    $region55: #{tpu_custom_call.1} parent=1 // pred_check_branch
      %86 = sbr.rel (%p84) target = $region57
    $region56: #{tpu_custom_call.1} parent=1 // pred_region
      %v87 = vld [vmem:[%s5] sm:$0xff]
      %v88 = vld [vmem:[%s5 + $0x8] sm:$0xff]
      %v89 = vld [vmem:[%s6] sm:$0xff]
      %v90 = vld [vmem:[%s6 + $0x8] sm:$0xff]
      %vm91 = vcmp.gt.f32.partialorder %v89, 0.0
      %vm92 = vcmp.gt.f32.partialorder %v90, 0.0
      %v93 = vsel %vm91, %v87, 1.0
      %v94 = vsel %vm92, %v88, 1.0
      %v95 = vld [vmem:[#allocation2] sm:$0xff]
      %v96 = vld [vmem:[#allocation2 + $0x8] sm:$0xff]
      %v97 = vlog2.pop %v93
      %v98 = vmul.f32 %v97, 0.6931472
      %v99 = vlog2.pop %v94
      %v100 = vmul.f32 %v99, 0.6931472
      %v101 = vmul.f32 %v98, %v89
      %v102 = vmul.f32 %v100, %v90
      %v103 = vsel %vm91, %v101, 0.0
      %v104 = vsel %vm92, %v102, 0.0
      %v105 = vadd.f32 %v95, %v103
      %v106 = vadd.f32 %v96, %v104
      %vm107 = vcmask 130048
      %108 = vst.msk [vmem:[#allocation2] sm:$0xff] %vm107, %v105
      %109 = vst.msk [vmem:[#allocation2 + $0x8] sm:$0xff] %vm107, %v106
      %v110 = vld [vmem:[%s7] sm:$0xff]
      %v111 = vld [vmem:[%s7 + $0x8] sm:$0xff]
      %v112 = vld [vmem:[%s8] sm:$0xff]
      %v113 = vld [vmem:[%s8 + $0x8] sm:$0xff]
      %vm114 = vcmp.gt.f32.partialorder %v112, 0.0
      %vm115 = vcmp.gt.f32.partialorder %v113, 0.0
      %v116 = vsel %vm114, %v110, 1.0
      %v117 = vsel %vm115, %v111, 1.0
      %v118 = vld [vmem:[#allocation3] sm:$0xff]
      %v119 = vld [vmem:[#allocation3 + $0x8] sm:$0xff]
      %v120 = vlog2.pop %v116
      %v121 = vmul.f32 %v120, 0.6931472
      %v122 = vlog2.pop %v117
      %v123 = vmul.f32 %v122, 0.6931472
      %v124 = vmul.f32 %v121, %v112
      %v125 = vmul.f32 %v123, %v113
      %v126 = vsel %vm114, %v124, 0.0
      %v127 = vsel %vm115, %v125, 0.0
      %v128 = vadd.f32 %v118, %v126
      %v129 = vadd.f32 %v119, %v127
      %vm130 = vcmask 31744
      %131 = vst.msk [vmem:[#allocation3] sm:$0xff] %vm130, %v128
      %132 = vst.msk [vmem:[#allocation3 + $0x8] sm:$0xff] %vm130, %v129
      %s133 = smul.u32 0, 256
      %v134 = vlaneseq
      %v135 = vand.u32 %v134, 127
      %v136 = vadd.s32 %v135, 128
      %v137 = vstv %s133
      %v138 = vadd.s32 %v135, %v137
      %v139 = vadd.s32 %v136, %v137
      %vm140 = vcmp.lt.s32.totalorder %v138, 256
      %vm141 = vcmp.lt.s32.totalorder %v139, 256
      %v142 = vld [vmem:[%s3] ss:$4 sm:$0x3]
      %s143 = scalar_lea.vmem %s3, 8
      %v144 = vld [vmem:[%s143] ss:$4 sm:$0x3]
      %s145 = scalar_lea.vmem %s3, 1
      %v146 = vld [vmem:[%s145] ss:$4 sm:$0x3]
      %s147 = scalar_lea.vmem %s3, 9
      %v148 = vld [vmem:[%s147] ss:$4 sm:$0x3]
      %s149 = scalar_lea.vmem %s3, 2
      %v150 = vld [vmem:[%s149] ss:$4 sm:$0x3]
      %s151 = scalar_lea.vmem %s3, 10
      %v152 = vld [vmem:[%s151] ss:$4 sm:$0x3]
      %v153 = vld [vmem:[%s4] ss:$4 sm:$0x3]
      %s154 = scalar_lea.vmem %s4, 8
      %v155 = vld [vmem:[%s154] ss:$4 sm:$0x3]
      %s156 = scalar_lea.vmem %s4, 1
      %v157 = vld [vmem:[%s156] ss:$4 sm:$0x3]
      %s158 = scalar_lea.vmem %s4, 9
      %v159 = vld [vmem:[%s158] ss:$4 sm:$0x3]
      %s160 = scalar_lea.vmem %s4, 2
      %v161 = vld [vmem:[%s160] ss:$4 sm:$0x3]
      %s162 = scalar_lea.vmem %s4, 10
      %v163 = vld [vmem:[%s162] ss:$4 sm:$0x3]
      %s164 = sld [smem:[#allocation5]]
      %v165 = vstv %s164
      %v166 = vmul.f32 %v165, %v142
      %v167 = vmul.f32 %v165, %v144
      %s168 = sld [smem:[#allocation8]]
      %v169 = vstv %s168
      %v170 = vmul.f32 %v169, %v153
      %v171 = vmul.f32 %v169, %v155
      %v172 = vsub.f32 %v166, %v170
      %v173 = vsub.f32 %v167, %v171
      %s174 = sld [smem:[#allocation10]]
      %v175 = vstv %s174
      %v176 = vadd.f32 %v172, %v175
      %v177 = vadd.f32 %v173, %v175
      %s178 = sld [smem:[#allocation5 + $0x1]]
      %v179 = vstv %s178
      %v180 = vmul.f32 %v179, %v146
      %v181 = vmul.f32 %v179, %v148
      %v182 = vadd.f32 %v176, %v180
      %v183 = vadd.f32 %v177, %v181
      %s184 = sld [smem:[#allocation8 + $0x1]]
      %v185 = vstv %s184
      %v186 = vmul.f32 %v185, %v157
      %v187 = vmul.f32 %v185, %v159
      %v188 = vsub.f32 %v182, %v186
      %v189 = vsub.f32 %v183, %v187
      %s190 = sld [smem:[#allocation5 + $0x2]]
      %v191 = vstv %s190
      %v192 = vmul.f32 %v191, %v150
      %v193 = vmul.f32 %v191, %v152
      %v194 = vadd.f32 %v188, %v192
      %v195 = vadd.f32 %v189, %v193
      %s196 = sld [smem:[#allocation8 + $0x2]]
      %v197 = vstv %s196
      %v198 = vmul.f32 %v197, %v161
      %v199 = vmul.f32 %v197, %v163
      %v200 = vsub.f32 %v194, %v198
      %v201 = vsub.f32 %v195, %v199
      %v202 = vmul.f32 %v200, %v200
      %v203 = vmul.f32 %v201, %v201
      %v206 = vcombine.low %v202, %v203
      %v208 = vunpack.c.l.s4 1966171168
      %v209 = vunpack.c.0.s8 %v208
      %v210 = vlaneseq
      %v211 = vshrl.u32 %v210, 7
      %v212 = vsub.s32 %v209, %v211
      %v213 = vrot.slane %v206, %v212
      %v214 = vcombine.high %v213, %v213
      %v216 = vunpack.c.l.s4 1966171168
      %v217 = vunpack.c.0.s8 %v216
      %v218 = vlaneseq
      %v219 = vshrl.u32 %v218, 7
      %v220 = vsub.s32 %v217, %v219
      %v221 = vrot.slane %v213, %v220
      %v223 = vunpack.c.l.s4 1966171168
      %v224 = vunpack.c.0.s8 %v223
      %v225 = vlaneseq
      %v226 = vshrl.u32 %v225, 7
      %v227 = vsub.s32 %v224, %v226
      %v228 = vrot.slane %v214, %v227
      %v231 = vsel %vm140, %v221, 0.0
      %v232 = vsel %vm141, %v228, 0.0
      %v233 = vadd.f32 %v231, 0.0
      %v234 = vadd.f32 %v232, 0.0
      %s235 = sld [smem:[#allocation5 + $0x80]]
      %v236 = vstv %s235
      %v237 = vmul.f32 %v236, %v142
      %v238 = vmul.f32 %v236, %v144
      %s239 = sld [smem:[#allocation8 + $0x80]]
      %v240 = vstv %s239
      %v241 = vmul.f32 %v240, %v153
      %v242 = vmul.f32 %v240, %v155
      %v243 = vsub.f32 %v237, %v241
      %v244 = vsub.f32 %v238, %v242
      %s245 = sld [smem:[#allocation10 + $0x1]]
      %v246 = vstv %s245
      %v247 = vadd.f32 %v243, %v246
      %v248 = vadd.f32 %v244, %v246
      %s249 = sld [smem:[#allocation5 + $0x81]]
      %v250 = vstv %s249
      %v251 = vmul.f32 %v250, %v146
      %v252 = vmul.f32 %v250, %v148
      %v253 = vadd.f32 %v247, %v251
      %v254 = vadd.f32 %v248, %v252
      %s255 = sld [smem:[#allocation8 + $0x81]]
      %v256 = vstv %s255
      %v257 = vmul.f32 %v256, %v157
      %v258 = vmul.f32 %v256, %v159
      %v259 = vsub.f32 %v253, %v257
      %v260 = vsub.f32 %v254, %v258
      %s261 = sld [smem:[#allocation5 + $0x82]]
      %v262 = vstv %s261
      %v263 = vmul.f32 %v262, %v150
      %v264 = vmul.f32 %v262, %v152
      %v265 = vadd.f32 %v259, %v263
      %v266 = vadd.f32 %v260, %v264
      %s267 = sld [smem:[#allocation8 + $0x82]]
      %v268 = vstv %s267
      %v269 = vmul.f32 %v268, %v161
      %v270 = vmul.f32 %v268, %v163
      %v271 = vsub.f32 %v265, %v269
      %v272 = vsub.f32 %v266, %v270
      %v273 = vmul.f32 %v271, %v271
      %v274 = vmul.f32 %v272, %v272
      %v277 = vcombine.low %v273, %v274
      %v279 = vunpack.c.l.s4 1966171168
      %v280 = vunpack.c.0.s8 %v279
      %v281 = vlaneseq
      %v282 = vshrl.u32 %v281, 7
      %v283 = vsub.s32 %v280, %v282
      %v284 = vrot.slane %v277, %v283
      %v285 = vcombine.high %v284, %v284
      %v287 = vunpack.c.l.s4 1966171168
      %v288 = vunpack.c.0.s8 %v287
      %v289 = vlaneseq
      %v290 = vshrl.u32 %v289, 7
      %v291 = vsub.s32 %v288, %v290
      %v292 = vrot.slane %v284, %v291
      %v294 = vunpack.c.l.s4 1966171168
      %v295 = vunpack.c.0.s8 %v294
      %v296 = vlaneseq
      %v297 = vshrl.u32 %v296, 7
      %v298 = vsub.s32 %v295, %v297
      %v299 = vrot.slane %v285, %v298
      %v302 = vsel %vm140, %v292, 0.0
      %v303 = vsel %vm141, %v299, 0.0
      %v304 = vadd.f32 %v233, %v302
      %v305 = vadd.f32 %v234, %v303
      %s306 = sld [smem:[#allocation5 + $0x100]]
      %v307 = vstv %s306
      %v308 = vmul.f32 %v307, %v142
      %v309 = vmul.f32 %v307, %v144
      %s310 = sld [smem:[#allocation8 + $0x100]]
      %v311 = vstv %s310
      %v312 = vmul.f32 %v311, %v153
      %v313 = vmul.f32 %v311, %v155
      %v314 = vsub.f32 %v308, %v312
      %v315 = vsub.f32 %v309, %v313
      %s316 = sld [smem:[#allocation10 + $0x2]]
      %v317 = vstv %s316
      %v318 = vadd.f32 %v314, %v317
      %v319 = vadd.f32 %v315, %v317
      %s320 = sld [smem:[#allocation5 + $0x101]]
      %v321 = vstv %s320
      %v322 = vmul.f32 %v321, %v146
      %v323 = vmul.f32 %v321, %v148
      %v324 = vadd.f32 %v318, %v322
      %v325 = vadd.f32 %v319, %v323
      %s326 = sld [smem:[#allocation8 + $0x101]]
      %v327 = vstv %s326
      %v328 = vmul.f32 %v327, %v157
      %v329 = vmul.f32 %v327, %v159
      %v330 = vsub.f32 %v324, %v328
      %v331 = vsub.f32 %v325, %v329
      %s332 = sld [smem:[#allocation5 + $0x102]]
      %v333 = vstv %s332
      %v334 = vmul.f32 %v333, %v150
      %v335 = vmul.f32 %v333, %v152
      %v336 = vadd.f32 %v330, %v334
      %v337 = vadd.f32 %v331, %v335
      %s338 = sld [smem:[#allocation8 + $0x102]]
      %v339 = vstv %s338
      %v340 = vmul.f32 %v339, %v161
      %v341 = vmul.f32 %v339, %v163
      %v342 = vsub.f32 %v336, %v340
      %v343 = vsub.f32 %v337, %v341
      %v344 = vmul.f32 %v342, %v342
      %v345 = vmul.f32 %v343, %v343
      %v348 = vcombine.low %v344, %v345
      %v350 = vunpack.c.l.s4 1966171168
      %v351 = vunpack.c.0.s8 %v350
      %v352 = vlaneseq
      %v353 = vshrl.u32 %v352, 7
      %v354 = vsub.s32 %v351, %v353
      %v355 = vrot.slane %v348, %v354
      %v356 = vcombine.high %v355, %v355
      %v358 = vunpack.c.l.s4 1966171168
      %v359 = vunpack.c.0.s8 %v358
      %v360 = vlaneseq
      %v361 = vshrl.u32 %v360, 7
      %v362 = vsub.s32 %v359, %v361
      %v363 = vrot.slane %v355, %v362
      %v365 = vunpack.c.l.s4 1966171168
      %v366 = vunpack.c.0.s8 %v365
      %v367 = vlaneseq
      %v368 = vshrl.u32 %v367, 7
      %v369 = vsub.s32 %v366, %v368
      %v370 = vrot.slane %v356, %v369
      %v373 = vsel %vm140, %v363, 0.0
      %v374 = vsel %vm141, %v370, 0.0
      %v375 = vadd.f32 %v304, %v373
      %v376 = vadd.f32 %v305, %v374
      %v377 = vld [vmem:[#allocation4] sm:$0xf]
      %v380 = vcombine.low %v375, %v376
      %v382 = vunpack.c.l.s4 1983009808
      %v383 = vunpack.c.0.s8 %v382
      %v384 = vlaneseq
      %v385 = vshrl.u32 %v384, 7
      %v386 = vsub.s32 %v383, %v385
      %v387 = vrot.slane %v380, %v386
      %v389 = vadd.f32 %v377, %v387
      %390 = vst [vmem:[#allocation4] sm:$0xf] %v389
    $region57: #{tpu_custom_call.1} parent=1 // pred_fallthru
      _
    // Predicated region
    $region58: #{tpu_custom_call.1} parent=1 // pred_check
      %p391 = pneg %p72
    $region59: #{tpu_custom_call.1} parent=1 // pred_check_branch
      %393 = sbr.rel (%p391) target = $region61
    $region60: #{tpu_custom_call.1} parent=1 // pred_region
      %v394 = vld [vmem:[#allocation2] sm:$0xff]
      %v395 = vld [vmem:[#allocation2 + $0x8] sm:$0xff]
      %vm396 = vcmask 130048
      %v397 = vsel %vm396, %v394, 0.0
      %v398 = vsel %vm396, %v395, 0.0
      %v399 = vadd.f32 %v397, %v398
      %400 = vadd.xlane.f32.xlu0 %v399
      %v401 = vpop.xlane.xlu0 %400
      %v402 = vrot.slane %v401, 4
      %v403 = vadd.f32 %v401, %v402
      %v404 = vrot.slane %v403, 2
      %v405 = vadd.f32 %v403, %v404
      %v406 = vrot.slane %v405, 1
      %v407 = vadd.f32 %v405, %v406
      %s408 = vtos %v407
      %v409 = vld [vmem:[#allocation3] sm:$0xff]
      %v410 = vld [vmem:[#allocation3 + $0x8] sm:$0xff]
      %vm411 = vcmask 31744
      %v412 = vsel %vm411, %v409, 0.0
      %v413 = vsel %vm411, %v410, 0.0
      %v414 = vadd.f32 %v412, %v413
      %415 = vadd.xlane.f32.xlu0 %v414
      %v416 = vpop.xlane.xlu0 %415
      %v417 = vrot.slane %v416, 4
      %v418 = vadd.f32 %v416, %v417
      %v419 = vrot.slane %v418, 2
      %v420 = vadd.f32 %v418, %v419
      %v421 = vrot.slane %v420, 1
      %v422 = vadd.f32 %v420, %v421
      %s423 = vtos %v422
      %s424 = sadd.f32 %s408, %s423
      %v425 = vstv %s424
      %v426 = vadd.f32 %v425, 0.0
      %vm427 = vcmask 0
      %428 = vst.msk [vmem:[#allocation11] sm:$0x1] %vm427, %v426
      %v429 = vld [vmem:[#allocation4] sm:$0xf]
      %v432 = vunpack.c.l.s4 1983009808
      %v433 = vunpack.c.0.s8 %v432
      %v434 = vlaneseq
      %v435 = vshrl.u32 %v434, 7
      %v436 = vsub.s32 %v433, %v435
      %v437 = vrot.slane %v429, %v436
      %v438 = vcombine.high %v437, %v437
      %vm441 = vcmask 1041408
      %v442 = vsel %vm441, %v437, 0.0
      %v443 = vsel %vm441, %v438, 0.0
      %v444 = vadd.f32 %v442, %v443
      %445 = vadd.xlane.f32.xlu0 %v444
      %v446 = vpop.xlane.xlu0 %445
      %v447 = vrot.slane %v446, 4
      %v448 = vadd.f32 %v446, %v447
      %v449 = vrot.slane %v448, 2
      %v450 = vadd.f32 %v448, %v449
      %v451 = vrot.slane %v450, 1
      %v452 = vadd.f32 %v450, %v451
      %s453 = vtos %v452
      %v454 = vstv %s453
      %v455 = vadd.f32 %v454, 0.0
      %456 = vst.msk [vmem:[#allocation12] sm:$0x1] %vm427, %v455
    $region61: #{tpu_custom_call.1} parent=1 // pred_fallthru
      _
    // Predicated region
    $region62: #{tpu_custom_call.1} parent=1 // pred_check
      _
    $region63: #{tpu_custom_call.1} parent=1 // pred_check_branch
      %458 = sbr.rel (0) target = $region65
    $region64: #{tpu_custom_call.1} parent=1 // pred_region
      %s460 = ssub.s32 16, 16
      %461 = vsyncadd [#allocation6], %s460
      %s463 = sshll.u32 [#allocation11], 4
      %s464 = int_to_ptr.vmem [resolvable:$true] %s463
      %466 = dma.vmem_to_hbm [thread:$0]  %s464, 16, %s9, [#allocation6]
    $region65: #{tpu_custom_call.1} parent=1 // pred_fallthru
      _
    // Predicated region
    $region66: #{tpu_custom_call.1} parent=1 // pred_check
      _
    $region67: #{tpu_custom_call.1} parent=1 // pred_check_branch
      %468 = sbr.rel (0) target = $region69
    $region68: #{tpu_custom_call.1} parent=1 // pred_region
      %s470 = ssub.s32 16, 16
      %471 = vsyncadd [#allocation13], %s470
      %s473 = sshll.u32 [#allocation12], 4
      %s474 = int_to_ptr.vmem [resolvable:$true] %s473
      %476 = dma.vmem_to_hbm [thread:$0]  %s474, 16, %s10, [#allocation13]
    $region69: #{tpu_custom_call.1} parent=1 // pred_fallthru
      _
    // Predicated region
    $region70: #{tpu_custom_call.1} parent=1 // pred_check
      _
    $region71: #{tpu_custom_call.1} parent=1 // pred_check_branch
      %478 = sbr.rel (0) target = $region73
    $region72: #{tpu_custom_call.1} parent=1 // pred_region
      %479 = dma.done [#allocation6], 16
    $region73: #{tpu_custom_call.1} parent=1 // pred_fallthru
      _
    // Predicated region
    $region74: #{tpu_custom_call.1} parent=1 // pred_check
      _
    $region75: #{tpu_custom_call.1} parent=1 // pred_check_branch
      %481 = sbr.rel (0) target = $region77
    $region76: #{tpu_custom_call.1} parent=1 // pred_region
      %482 = dma.done [#allocation13], 16
    $region77: #{tpu_custom_call.1} parent=1 // pred_fallthru
      _
    %483 = vsyncpa [#allocation6], 1
    %484 = vsyncpa [#allocation13], 1
    %485 = vsyncpa [#allocation7], 1
    %486 = vsyncpa [#allocation9], 1

</llo_original>
